<compile_context>
chip_gen: v5e
topology: v5e:2x2
jax: 0.10.0
libtpu: 0.0.40
codegen_flags: <defaults>
</compile_context>

<pallas_src>
import jax
import jax.numpy as jnp
from jax.experimental import pallas as pl
from jax.experimental.pallas import tpu as pltpu


def _make_encoder_kernel(k, ho, wo):
    m = ho * wo

    def kernel(x_ref, w_ref, scale_ref, shift_ref, o_ref):
        # x_ref:     (1, 2k, Cin, Hq*Wo) bf16 -- tap planes, view = 2*kw + (kh%2)
        # w_ref:     (k*k, Cout, Cin)    bf16 -- w_ref[kh*k+kw][co,ci] = w[co,ci,kh,kw]
        # scale_ref: (Cout, 1) f32, shift_ref: (Cout, 1) f32
        # o_ref:     (1, Cout, Ho*Wo) f32  (flattened NCHW, lane dim = Ho*Wo)
        cout = o_ref.shape[1]
        acc = jnp.zeros((cout, m), jnp.float32)
        for kh in range(k):
            pr, dr = kh % 2, kh // 2
            row0 = dr * wo  # static lane offset into the flattened (Hq, Wo) plane
            for kw in range(k):
                tap = x_ref[0, 2 * kw + pr, :, row0:row0 + m]   # (Cin, Ho*Wo) bf16
                w_tap = w_ref[kh * k + kw]                       # (Cout, Cin)  bf16
                acc = acc + jnp.dot(w_tap, tap,
                                    preferred_element_type=jnp.float32)
        # fused (folded) BatchNorm + LeakyReLU(0.1), all f32
        y = acc * scale_ref[...] + shift_ref[...]
        y = jnp.where(y >= 0.0, y, 0.1 * y)
        o_ref[0] = y.astype(o_ref.dtype)

    return kernel


def encoder_forward(x_nchw, conv_w, conv_b, bn_gamma, bn_beta, bn_mean, bn_var,
                    *, stride=2, eps=1e-5):
    N, Cin, H, W = x_nchw.shape
    Cout, _, k, _ = conv_w.shape
    assert stride == 2 and k % 2 == 1 and H % 2 == 0 and W % 2 == 0
    pad = (k - 1) // 2
    Ho = (H + 2 * pad - k) // stride + 1
    Wo = (W + 2 * pad - k) // stride + 1
    Hq = Ho + pad  # rows per row-parity plane

    # --- glue: pad, then build 2k "tap planes" (a ~k/2x relayout, NOT a k^2 im2col) ---
    # plane[n, 2*kw+pr, ci, r, wo] = x_pad[n, ci, 2*r + pr, kw + 2*wo]
    xp = jnp.pad(x_nchw, ((0, 0), (0, 0), (pad, pad), (pad, pad)))
    views = []
    for kw in range(k):
        cv = xp[:, :, :, kw:kw + 2 * Wo - 1:2]                  # (N, Cin, Hp, Wo)
        for pr in range(2):
            views.append(cv[:, :, pr:pr + 2 * Hq - 1:2, :])     # (N, Cin, Hq, Wo)
    xprep = jnp.stack(views, axis=1)                            # (N, 2k, Cin, Hq, Wo)
    xprep = xprep.reshape(N, 2 * k, Cin, Hq * Wo).astype(jnp.bfloat16)

    # conv weight (Cout, Cin, k, k) -> (k*k, Cout, Cin), bf16 for the MXU
    wmat = jnp.transpose(conv_w, (2, 3, 0, 1)).reshape(k * k, Cout, Cin)
    wmat = wmat.astype(jnp.bfloat16)

    # fold conv bias + inference-mode BatchNorm into per-channel scale/shift (f32)
    scale = bn_gamma / jnp.sqrt(bn_var + eps)
    shift = bn_beta + (conv_b - bn_mean) * scale
    scale2 = scale.reshape(Cout, 1).astype(jnp.float32)
    shift2 = shift.reshape(Cout, 1).astype(jnp.float32)

    kernel = _make_encoder_kernel(k, Ho, Wo)
    out = pl.pallas_call(
        kernel,
        out_shape=jax.ShapeDtypeStruct((N, Cout, Ho * Wo), jnp.float32),
        grid=(N,),
        in_specs=[
            pl.BlockSpec((1, 2 * k, Cin, Hq * Wo), lambda n: (n, 0, 0, 0)),
            pl.BlockSpec((k * k, Cout, Cin), lambda n: (0, 0, 0)),
            pl.BlockSpec((Cout, 1), lambda n: (0, 0)),
            pl.BlockSpec((Cout, 1), lambda n: (0, 0)),
        ],
        out_specs=pl.BlockSpec((1, Cout, Ho * Wo), lambda n: (n, 0, 0)),
        compiler_params=pltpu.CompilerParams(
            dimension_semantics=("parallel",)),
    )(xprep, wmat, scale2, shift2)

    # (N, Cout, Ho*Wo) is already NCHW order -> free reshape, no transpose.
    return out.reshape(N, Cout, Ho, Wo)


def _reference(x, w, b, gamma, beta, mean, var, eps=1e-5):
    k = w.shape[2]
    pad = (k - 1) // 2
    y = jax.lax.conv_general_dilated(
        x, w, window_strides=(2, 2), padding=[(pad, pad), (pad, pad)],
        dimension_numbers=("NCHW", "OIHW", "NCHW"))
    y = y + b.reshape(1, -1, 1, 1)
    y = (y - mean.reshape(1, -1, 1, 1)) / jnp.sqrt(var.reshape(1, -1, 1, 1) + eps)
    y = y * gamma.reshape(1, -1, 1, 1) + beta.reshape(1, -1, 1, 1)
    return jnp.where(y >= 0, y, 0.1 * y)


if __name__ == "__main__":
    # Small shapes consistent with Encoder(input_channels=4, kernel_size=3)
    N, Cin, H, W = 2, 4, 16, 16
    Cout, k = 8, 3

    key = jax.random.PRNGKey(0)
    kx, kw_, kb, kg, kbe, km, kv = jax.random.split(key, 7)

    x = jax.random.normal(kx, (N, Cin, H, W), dtype=jnp.float32)
    conv_w = 0.1 * jax.random.normal(kw_, (Cout, Cin, k, k), dtype=jnp.float32)
    conv_b = 0.05 * jax.random.normal(kb, (Cout,), dtype=jnp.float32)
    bn_gamma = 1.0 + 0.1 * jax.random.normal(kg, (Cout,), dtype=jnp.float32)
    bn_beta = 0.1 * jax.random.normal(kbe, (Cout,), dtype=jnp.float32)
    bn_mean = 0.1 * jax.random.normal(km, (Cout,), dtype=jnp.float32)
    bn_var = 0.5 + jax.random.uniform(kv, (Cout,), dtype=jnp.float32)

    out = jax.block_until_ready(
        encoder_forward(x, conv_w, conv_b, bn_gamma, bn_beta, bn_mean, bn_var))

    # Tight check against a reference with the same bf16 rounding of x / conv_w
    # (the kernel feeds the MXU bf16 operands, accumulates in f32).
    x_bf = x.astype(jnp.bfloat16).astype(jnp.float32)
    w_bf = conv_w.astype(jnp.bfloat16).astype(jnp.float32)
    ref_bf = jax.block_until_ready(
        _reference(x_bf, w_bf, conv_b, bn_gamma, bn_beta, bn_mean, bn_var))
    # Loose check against the full-f32 reference (bounds bf16 quantization error).
    ref_f32 = jax.block_until_ready(
        _reference(x, conv_w, conv_b, bn_gamma, bn_beta, bn_mean, bn_var))

    assert out.shape == (N, Cout, H // 2, W // 2), out.shape
    assert jnp.allclose(out, ref_bf, atol=1e-3, rtol=1e-3), \
        float(jnp.max(jnp.abs(out - ref_bf)))
    assert jnp.allclose(out, ref_f32, atol=5e-2, rtol=5e-2), \
        float(jnp.max(jnp.abs(out - ref_f32)))

    print("KERNEL_OK")
</pallas_src>

<mosaic_0001>
module attributes {stable_mosaic.version = 11 : i64} {
  func.func @kernel(%arg0: i32, %arg1: memref<1x6x4x72xbf16, #tpu.memory_space<vmem>>, %arg2: memref<9x8x4xbf16, #tpu.memory_space<vmem>>, %arg3: memref<8x1xf32, #tpu.memory_space<vmem>>, %arg4: memref<8x1xf32, #tpu.memory_space<vmem>>, %arg5: memref<1x8x64xf32, #tpu.memory_space<vmem>>) attributes {dimension_semantics = [#tpu.dimension_semantics<parallel>], iteration_bounds = array<i64: 2>, scalar_prefetch = 0 : i64, scratch_operands = 0 : i64, tpu.core_type = #tpu.core_type<tc>, window_params = [{transform_indices = @transform_0, window_bounds = array<i64: 1, 6, 4, 72>}, {pipeline_mode = #tpu.pipeline_mode<synchronous>, transform_indices = @transform_1, window_bounds = array<i64: 9, 8, 4>}, {pipeline_mode = #tpu.pipeline_mode<synchronous>, transform_indices = @transform_2, window_bounds = array<i64: 8, 1>}, {pipeline_mode = #tpu.pipeline_mode<synchronous>, transform_indices = @transform_3, window_bounds = array<i64: 8, 1>}, {transform_indices = @transform_4, window_bounds = array<i64: 1, 8, 64>}]} {
    %cst = arith.constant 0.000000e+00 : f32
    %0 = vector.broadcast %cst : f32 to vector<8x64xf32>
    %c0 = arith.constant 0 : index
    %c0_0 = arith.constant 0 : index
    %c0_1 = arith.constant 0 : index
    %c0_2 = arith.constant 0 : index
    %1 = vector.load %arg1[%c0, %c0_0, %c0_1, %c0_2] : memref<1x6x4x72xbf16, #tpu.memory_space<vmem>>, vector<1x1x4x64xbf16>
    %2 = vector.shape_cast %1 : vector<1x1x4x64xbf16> to vector<4x64xbf16>
    %c0_3 = arith.constant 0 : index
    %c0_4 = arith.constant 0 : index
    %c0_5 = arith.constant 0 : index
    %3 = vector.load %arg2[%c0_3, %c0_4, %c0_5] : memref<9x8x4xbf16, #tpu.memory_space<vmem>>, vector<1x8x4xbf16>
    %4 = vector.shape_cast %3 : vector<1x8x4xbf16> to vector<8x4xbf16>
    %cst_6 = arith.constant dense<0.000000e+00> : vector<8x64xf32>
    %5 = tpu.matmul %4, %2, %cst_6 {dimension_numbers = #tpu.dot_dimension_numbers<[1], [0], [0], [1], [0, 0, 1, 1], [], []>} : vector<8x4xbf16>, vector<4x64xbf16>, vector<8x64xf32> -> vector<8x64xf32>
    %6 = arith.addf %0, %5 : vector<8x64xf32>
    %c0_7 = arith.constant 0 : index
    %c2 = arith.constant 2 : index
    %c0_8 = arith.constant 0 : index
    %c0_9 = arith.constant 0 : index
    %7 = vector.load %arg1[%c0_7, %c2, %c0_8, %c0_9] : memref<1x6x4x72xbf16, #tpu.memory_space<vmem>>, vector<1x1x4x64xbf16>
    %8 = vector.shape_cast %7 : vector<1x1x4x64xbf16> to vector<4x64xbf16>
    %c1 = arith.constant 1 : index
    %c0_10 = arith.constant 0 : index
    %c0_11 = arith.constant 0 : index
    %9 = vector.load %arg2[%c1, %c0_10, %c0_11] : memref<9x8x4xbf16, #tpu.memory_space<vmem>>, vector<1x8x4xbf16>
    %10 = vector.shape_cast %9 : vector<1x8x4xbf16> to vector<8x4xbf16>
    %cst_12 = arith.constant dense<0.000000e+00> : vector<8x64xf32>
    %11 = tpu.matmul %10, %8, %cst_12 {dimension_numbers = #tpu.dot_dimension_numbers<[1], [0], [0], [1], [0, 0, 1, 1], [], []>} : vector<8x4xbf16>, vector<4x64xbf16>, vector<8x64xf32> -> vector<8x64xf32>
    %12 = arith.addf %6, %11 : vector<8x64xf32>
    %c0_13 = arith.constant 0 : index
    %c4 = arith.constant 4 : index
    %c0_14 = arith.constant 0 : index
    %c0_15 = arith.constant 0 : index
    %13 = vector.load %arg1[%c0_13, %c4, %c0_14, %c0_15] : memref<1x6x4x72xbf16, #tpu.memory_space<vmem>>, vector<1x1x4x64xbf16>
    %14 = vector.shape_cast %13 : vector<1x1x4x64xbf16> to vector<4x64xbf16>
    %c2_16 = arith.constant 2 : index
    %c0_17 = arith.constant 0 : index
    %c0_18 = arith.constant 0 : index
    %15 = vector.load %arg2[%c2_16, %c0_17, %c0_18] : memref<9x8x4xbf16, #tpu.memory_space<vmem>>, vector<1x8x4xbf16>
    %16 = vector.shape_cast %15 : vector<1x8x4xbf16> to vector<8x4xbf16>
    %cst_19 = arith.constant dense<0.000000e+00> : vector<8x64xf32>
    %17 = tpu.matmul %16, %14, %cst_19 {dimension_numbers = #tpu.dot_dimension_numbers<[1], [0], [0], [1], [0, 0, 1, 1], [], []>} : vector<8x4xbf16>, vector<4x64xbf16>, vector<8x64xf32> -> vector<8x64xf32>
    %18 = arith.addf %12, %17 : vector<8x64xf32>
    %c0_20 = arith.constant 0 : index
    %c1_21 = arith.constant 1 : index
    %c0_22 = arith.constant 0 : index
    %c0_23 = arith.constant 0 : index
    %19 = vector.load %arg1[%c0_20, %c1_21, %c0_22, %c0_23] : memref<1x6x4x72xbf16, #tpu.memory_space<vmem>>, vector<1x1x4x64xbf16>
    %20 = vector.shape_cast %19 : vector<1x1x4x64xbf16> to vector<4x64xbf16>
    %c3 = arith.constant 3 : index
    %c0_24 = arith.constant 0 : index
    %c0_25 = arith.constant 0 : index
    %21 = vector.load %arg2[%c3, %c0_24, %c0_25] : memref<9x8x4xbf16, #tpu.memory_space<vmem>>, vector<1x8x4xbf16>
    %22 = vector.shape_cast %21 : vector<1x8x4xbf16> to vector<8x4xbf16>
    %cst_26 = arith.constant dense<0.000000e+00> : vector<8x64xf32>
    %23 = tpu.matmul %22, %20, %cst_26 {dimension_numbers = #tpu.dot_dimension_numbers<[1], [0], [0], [1], [0, 0, 1, 1], [], []>} : vector<8x4xbf16>, vector<4x64xbf16>, vector<8x64xf32> -> vector<8x64xf32>
    %24 = arith.addf %18, %23 : vector<8x64xf32>
    %c0_27 = arith.constant 0 : index
    %c3_28 = arith.constant 3 : index
    %c0_29 = arith.constant 0 : index
    %c0_30 = arith.constant 0 : index
    %25 = vector.load %arg1[%c0_27, %c3_28, %c0_29, %c0_30] : memref<1x6x4x72xbf16, #tpu.memory_space<vmem>>, vector<1x1x4x64xbf16>
    %26 = vector.shape_cast %25 : vector<1x1x4x64xbf16> to vector<4x64xbf16>
    %c4_31 = arith.constant 4 : index
    %c0_32 = arith.constant 0 : index
    %c0_33 = arith.constant 0 : index
    %27 = vector.load %arg2[%c4_31, %c0_32, %c0_33] : memref<9x8x4xbf16, #tpu.memory_space<vmem>>, vector<1x8x4xbf16>
    %28 = vector.shape_cast %27 : vector<1x8x4xbf16> to vector<8x4xbf16>
    %cst_34 = arith.constant dense<0.000000e+00> : vector<8x64xf32>
    %29 = tpu.matmul %28, %26, %cst_34 {dimension_numbers = #tpu.dot_dimension_numbers<[1], [0], [0], [1], [0, 0, 1, 1], [], []>} : vector<8x4xbf16>, vector<4x64xbf16>, vector<8x64xf32> -> vector<8x64xf32>
    %30 = arith.addf %24, %29 : vector<8x64xf32>
    %c0_35 = arith.constant 0 : index
    %c5 = arith.constant 5 : index
    %c0_36 = arith.constant 0 : index
    %c0_37 = arith.constant 0 : index
    %31 = vector.load %arg1[%c0_35, %c5, %c0_36, %c0_37] : memref<1x6x4x72xbf16, #tpu.memory_space<vmem>>, vector<1x1x4x64xbf16>
    %32 = vector.shape_cast %31 : vector<1x1x4x64xbf16> to vector<4x64xbf16>
    %c5_38 = arith.constant 5 : index
    %c0_39 = arith.constant 0 : index
    %c0_40 = arith.constant 0 : index
    %33 = vector.load %arg2[%c5_38, %c0_39, %c0_40] : memref<9x8x4xbf16, #tpu.memory_space<vmem>>, vector<1x8x4xbf16>
    %34 = vector.shape_cast %33 : vector<1x8x4xbf16> to vector<8x4xbf16>
    %cst_41 = arith.constant dense<0.000000e+00> : vector<8x64xf32>
    %35 = tpu.matmul %34, %32, %cst_41 {dimension_numbers = #tpu.dot_dimension_numbers<[1], [0], [0], [1], [0, 0, 1, 1], [], []>} : vector<8x4xbf16>, vector<4x64xbf16>, vector<8x64xf32> -> vector<8x64xf32>
    %36 = arith.addf %30, %35 : vector<8x64xf32>
    %c0_42 = arith.constant 0 : index
    %c0_43 = arith.constant 0 : index
    %c0_44 = arith.constant 0 : index
    %c8 = arith.constant 8 : index
    %37 = vector.load %arg1[%c0_42, %c0_43, %c0_44, %c8] : memref<1x6x4x72xbf16, #tpu.memory_space<vmem>>, vector<1x1x4x64xbf16>
    %38 = vector.shape_cast %37 : vector<1x1x4x64xbf16> to vector<4x64xbf16>
    %c6 = arith.constant 6 : index
    %c0_45 = arith.constant 0 : index
    %c0_46 = arith.constant 0 : index
    %39 = vector.load %arg2[%c6, %c0_45, %c0_46] : memref<9x8x4xbf16, #tpu.memory_space<vmem>>, vector<1x8x4xbf16>
    %40 = vector.shape_cast %39 : vector<1x8x4xbf16> to vector<8x4xbf16>
    %cst_47 = arith.constant dense<0.000000e+00> : vector<8x64xf32>
    %41 = tpu.matmul %40, %38, %cst_47 {dimension_numbers = #tpu.dot_dimension_numbers<[1], [0], [0], [1], [0, 0, 1, 1], [], []>} : vector<8x4xbf16>, vector<4x64xbf16>, vector<8x64xf32> -> vector<8x64xf32>
    %42 = arith.addf %36, %41 : vector<8x64xf32>
    %c0_48 = arith.constant 0 : index
    %c2_49 = arith.constant 2 : index
    %c0_50 = arith.constant 0 : index
    %c8_51 = arith.constant 8 : index
    %43 = vector.load %arg1[%c0_48, %c2_49, %c0_50, %c8_51] : memref<1x6x4x72xbf16, #tpu.memory_space<vmem>>, vector<1x1x4x64xbf16>
    %44 = vector.shape_cast %43 : vector<1x1x4x64xbf16> to vector<4x64xbf16>
    %c7 = arith.constant 7 : index
    %c0_52 = arith.constant 0 : index
    %c0_53 = arith.constant 0 : index
    %45 = vector.load %arg2[%c7, %c0_52, %c0_53] : memref<9x8x4xbf16, #tpu.memory_space<vmem>>, vector<1x8x4xbf16>
    %46 = vector.shape_cast %45 : vector<1x8x4xbf16> to vector<8x4xbf16>
    %cst_54 = arith.constant dense<0.000000e+00> : vector<8x64xf32>
    %47 = tpu.matmul %46, %44, %cst_54 {dimension_numbers = #tpu.dot_dimension_numbers<[1], [0], [0], [1], [0, 0, 1, 1], [], []>} : vector<8x4xbf16>, vector<4x64xbf16>, vector<8x64xf32> -> vector<8x64xf32>
    %48 = arith.addf %42, %47 : vector<8x64xf32>
    %c0_55 = arith.constant 0 : index
    %c4_56 = arith.constant 4 : index
    %c0_57 = arith.constant 0 : index
    %c8_58 = arith.constant 8 : index
    %49 = vector.load %arg1[%c0_55, %c4_56, %c0_57, %c8_58] : memref<1x6x4x72xbf16, #tpu.memory_space<vmem>>, vector<1x1x4x64xbf16>
    %50 = vector.shape_cast %49 : vector<1x1x4x64xbf16> to vector<4x64xbf16>
    %c8_59 = arith.constant 8 : index
    %c0_60 = arith.constant 0 : index
    %c0_61 = arith.constant 0 : index
    %51 = vector.load %arg2[%c8_59, %c0_60, %c0_61] : memref<9x8x4xbf16, #tpu.memory_space<vmem>>, vector<1x8x4xbf16>
    %52 = vector.shape_cast %51 : vector<1x8x4xbf16> to vector<8x4xbf16>
    %cst_62 = arith.constant dense<0.000000e+00> : vector<8x64xf32>
    %53 = tpu.matmul %52, %50, %cst_62 {dimension_numbers = #tpu.dot_dimension_numbers<[1], [0], [0], [1], [0, 0, 1, 1], [], []>} : vector<8x4xbf16>, vector<4x64xbf16>, vector<8x64xf32> -> vector<8x64xf32>
    %54 = arith.addf %48, %53 : vector<8x64xf32>
    %c0_63 = arith.constant 0 : index
    %c0_64 = arith.constant 0 : index
    %55 = vector.load %arg3[%c0_63, %c0_64] : memref<8x1xf32, #tpu.memory_space<vmem>>, vector<8x1xf32>
    %56 = vector.broadcast %55 : vector<8x1xf32> to vector<8x64xf32>
    %57 = arith.mulf %54, %56 : vector<8x64xf32>
    %c0_65 = arith.constant 0 : index
    %c0_66 = arith.constant 0 : index
    %58 = vector.load %arg4[%c0_65, %c0_66] : memref<8x1xf32, #tpu.memory_space<vmem>>, vector<8x1xf32>
    %59 = vector.broadcast %58 : vector<8x1xf32> to vector<8x64xf32>
    %60 = arith.addf %57, %59 : vector<8x64xf32>
    %cst_67 = arith.constant 0.000000e+00 : f32
    %61 = vector.broadcast %cst_67 : f32 to vector<8x64xf32>
    %62 = arith.cmpf oge, %60, %61 : vector<8x64xf32>
    %cst_68 = arith.constant 1.000000e-01 : f32
    %63 = vector.broadcast %cst_68 : f32 to vector<8x64xf32>
    %64 = arith.mulf %63, %60 : vector<8x64xf32>
    %65 = arith.select %62, %60, %64 : vector<8x64xi1>, vector<8x64xf32>
    %c0_69 = arith.constant 0 : index
    %c0_70 = arith.constant 0 : index
    %c0_71 = arith.constant 0 : index
    %66 = vector.load %arg5[%c0_69, %c0_70, %c0_71] : memref<1x8x64xf32, #tpu.memory_space<vmem>>, vector<1x8x64xf32>
    %67 = vector.shape_cast %66 : vector<1x8x64xf32> to vector<8x64xf32>
    %68 = vector.shape_cast %65 : vector<8x64xf32> to vector<1x8x64xf32>
    tpu.vector_store %arg5[%c0_69, %c0_70, %c0_71], %68 {strides = array<i32>} : memref<1x8x64xf32, #tpu.memory_space<vmem>>, vector<1x8x64xf32>,
    return
  }
  func.func @transform_0(%arg0: i32) -> (i32, i32, i32, i32) {
    %c0_i32 = arith.constant 0 : i32
    %c0_i32_0 = arith.constant 0 : i32
    %c0_i32_1 = arith.constant 0 : i32
    %c0_i32_2 = arith.constant 0 : i32
    return %arg0, %c0_i32, %c0_i32_0, %c0_i32_1 : i32, i32, i32, i32
  }
  func.func @transform_1(%arg0: i32) -> (i32, i32, i32) {
    %c0_i32 = arith.constant 0 : i32
    %c0_i32_0 = arith.constant 0 : i32
    %c0_i32_1 = arith.constant 0 : i32
    %c0_i32_2 = arith.constant 0 : i32
    return %c0_i32, %c0_i32_0, %c0_i32_1 : i32, i32, i32
  }
  func.func @transform_2(%arg0: i32) -> (i32, i32) {
    %c0_i32 = arith.constant 0 : i32
    %c0_i32_0 = arith.constant 0 : i32
    %c0_i32_1 = arith.constant 0 : i32
    return %c0_i32, %c0_i32_0 : i32, i32
  }
  func.func @transform_3(%arg0: i32) -> (i32, i32) {
    %c0_i32 = arith.constant 0 : i32
    %c0_i32_0 = arith.constant 0 : i32
    %c0_i32_1 = arith.constant 0 : i32
    return %c0_i32, %c0_i32_0 : i32, i32
  }
  func.func @transform_4(%arg0: i32) -> (i32, i32, i32) {
    %c0_i32 = arith.constant 0 : i32
    %c0_i32_0 = arith.constant 0 : i32
    %c0_i32_1 = arith.constant 0 : i32
    return %arg0, %c0_i32, %c0_i32_0 : i32, i32, i32
  }
}

</mosaic_0001>

<llo_original>
// kernel: tpu_custom_call.1
$region0: #{tpu_custom_call.1}
  #allocation0 [shape = 'u32[]', space=smem, size = 0x4, offset = 0x4, fixed_abs, tag = 'smem constant byte address 0x4 - core index']
  #allocation1 [shape = 'u32[72,128]{1,0:T(1,128)}', space=vmem, size = 0x9000, scoped, tag = 'internal scratch']
  %s0 = inlined_call_operand.vmem [shape: bf16[2,6,4,72], index: 0, kind: input, shape index: {}]
  %s1 = inlined_call_operand.vmem [shape: bf16[9,8,4], index: 1, kind: input, shape index: {}]
  %s2 = inlined_call_operand.vmem [shape: f32[8,1], index: 2, kind: input, shape index: {}]
  %s3 = inlined_call_operand.vmem [shape: f32[8,1], index: 3, kind: input, shape index: {}]
  %s4 = inlined_call_operand.hbm [shape: f32[2,8,64], index: 4, kind: output, shape index: {}]
  %s5 = sld [smem:[#allocation0]]
  $region49: #{tpu_custom_call.1} parent=0
    _
  %s7 = ssub.s32 1, %s5
  %s8 = scalar_select 0, %s7, %s5
  $region1: #{tpu_custom_call.1} parent=0
    #allocation2 [shape = 'u8[8192]{0}', space=vmem, size = 0x2000, scoped, tag = 'output window, operand 0']
    #allocation3 [shape = 's32[2]{0}', space=sflag, size = 0x8, scoped, tag = 'scoped memory for tpu_custom_call.1']
    %9 = vsyncpa [#allocation3], 0
    %s10 = scalar_lea.sflag [#allocation3], 1
    %11 = vsyncpa %s10, 0
    loop: start=0, step=1, limit=4
    $region2: #{tpu_custom_call.1} parent=1 // loop_pre_header
      _
    $region3: #{tpu_custom_call.1} parent=1 // loop_header
      %s13 = sphi 0, %s17
      %p14 = scmp.ge.s32.totalorder %s13, 4
      %s23 = sphi 0, %s25
      %s26 = sphi 0, %s23
      %s27 = sphi 0, %s26
      %s43 = sphi 0, %s27
      %s47 = sphi 0, %s47
      %s49 = sphi 0, %s47
      %s50 = sphi 0, %s49
      %s64 = sphi 0, %s50
      %s68 = sphi 0, %s68
      %s70 = sphi 0, %s68
      %s71 = sphi 0, %s70
      %s85 = sphi 0, %s71
      %s89 = sphi 0, %s89
      %s91 = sphi 0, %s89
      %s92 = sphi 0, %s91
      %s106 = sphi 0, %s92
      %s112 = sphi 0, %s114
      %s115 = sphi 0, %s112
      %s116 = sphi 0, %s115
      %s132 = sphi 0, %s116
    $region4: #{tpu_custom_call.1} parent=1 // loop_header_branch
      %16 = sbr.rel (%p14) target = $region8
    $region5: #{tpu_custom_call.1} parent=1 // loop_body
      %s18 = ssub.s32 %s13, 1
      %s19 = ssub.s32 %s13, 2
      %s20 = sadd.s32 %s13, 1
      %s21 = ssub.s32 %s13, %s20
      %p22 = scmp.eq.s32.totalorder %s21, 0
      %s24 = sadd.s32 %s23, 1
      %s25 = scalar_select %p22, %s23, %s24
      %p28 = pneg %p22
      %p29 = scmp.eq.s32.totalorder %s13, 1
      %p30 = por %p28, %p29
      %p31 = scmp.ne.s32.totalorder %s23, %s26
      %p32 = scmp.eq.s32.totalorder %s13, 0
      %p33 = por %p31, %p32
      %p34 = scmp.ne.s32.totalorder %s23, %s26
      %p35 = scmp.eq.s32.totalorder %s18, 1
      %p36 = por %p34, %p35
      %p37 = scmp.ne.s32.totalorder %s26, %s27
      %p38 = scmp.eq.s32.totalorder %s18, 0
      %p39 = por %p37, %p38
      %p40 = scmp.ne.s32.totalorder %s26, %s27
      %p41 = scmp.eq.s32.totalorder %s19, 1
      %p42 = por %p40, %p41
      %p44 = scmp.ne.s32.totalorder %s27, %s43
      %p45 = scmp.eq.s32.totalorder %s19, 0
      %p46 = por %p44, %p45
      %s48 = sadd.s32 %s47, 1
      %p51 = scmp.eq.s32.totalorder %s13, 1
      %p52 = scmp.ne.s32.totalorder %s47, %s49
      %p53 = scmp.eq.s32.totalorder %s13, 0
      %p54 = por %p52, %p53
      %p55 = scmp.ne.s32.totalorder %s47, %s49
      %p56 = scmp.eq.s32.totalorder %s18, 1
      %p57 = por %p55, %p56
      %p58 = scmp.ne.s32.totalorder %s49, %s50
      %p59 = scmp.eq.s32.totalorder %s18, 0
      %p60 = por %p58, %p59
      %p61 = scmp.ne.s32.totalorder %s49, %s50
      %p62 = scmp.eq.s32.totalorder %s19, 1
      %p63 = por %p61, %p62
      %p65 = scmp.ne.s32.totalorder %s50, %s64
      %p66 = scmp.eq.s32.totalorder %s19, 0
      %p67 = por %p65, %p66
      %s69 = sadd.s32 %s68, 1
      %p72 = scmp.eq.s32.totalorder %s13, 1
      %p73 = scmp.ne.s32.totalorder %s68, %s70
      %p74 = scmp.eq.s32.totalorder %s13, 0
      %p75 = por %p73, %p74
      %p76 = scmp.ne.s32.totalorder %s68, %s70
      %p77 = scmp.eq.s32.totalorder %s18, 1
      %p78 = por %p76, %p77
      %p79 = scmp.ne.s32.totalorder %s70, %s71
      %p80 = scmp.eq.s32.totalorder %s18, 0
      %p81 = por %p79, %p80
      %p82 = scmp.ne.s32.totalorder %s70, %s71
      %p83 = scmp.eq.s32.totalorder %s19, 1
      %p84 = por %p82, %p83
      %p86 = scmp.ne.s32.totalorder %s71, %s85
      %p87 = scmp.eq.s32.totalorder %s19, 0
      %p88 = por %p86, %p87
      %s90 = sadd.s32 %s89, 1
      %p93 = scmp.eq.s32.totalorder %s13, 1
      %p94 = scmp.ne.s32.totalorder %s89, %s91
      %p95 = scmp.eq.s32.totalorder %s13, 0
      %p96 = por %p94, %p95
      %p97 = scmp.ne.s32.totalorder %s89, %s91
      %p98 = scmp.eq.s32.totalorder %s18, 1
      %p99 = por %p97, %p98
      %p100 = scmp.ne.s32.totalorder %s91, %s92
      %p101 = scmp.eq.s32.totalorder %s18, 0
      %p102 = por %p100, %p101
      %p103 = scmp.ne.s32.totalorder %s91, %s92
      %p104 = scmp.eq.s32.totalorder %s19, 1
      %p105 = por %p103, %p104
      %p107 = scmp.ne.s32.totalorder %s92, %s106
      %p108 = scmp.eq.s32.totalorder %s19, 0
      %p109 = por %p107, %p108
      %s110 = ssub.s32 %s13, %s20
      %p111 = scmp.eq.s32.totalorder %s110, 0
      %s113 = sadd.s32 %s112, 1
      %s114 = scalar_select %p111, %s112, %s113
      %p117 = pneg %p111
      %p118 = scmp.eq.s32.totalorder %s13, 1
      %p119 = por %p117, %p118
      %p120 = scmp.ne.s32.totalorder %s112, %s115
      %p121 = scmp.eq.s32.totalorder %s13, 0
      %p122 = por %p120, %p121
      %p123 = scmp.ne.s32.totalorder %s112, %s115
      %p124 = scmp.eq.s32.totalorder %s18, 1
      %p125 = por %p123, %p124
      %p126 = scmp.ne.s32.totalorder %s115, %s116
      %p127 = scmp.eq.s32.totalorder %s18, 0
      %p128 = por %p126, %p127
      %p129 = scmp.ne.s32.totalorder %s115, %s116
      %p130 = scmp.eq.s32.totalorder %s19, 1
      %p131 = por %p129, %p130
      %p133 = scmp.ne.s32.totalorder %s116, %s132
      %p134 = scmp.eq.s32.totalorder %s19, 0
      %p135 = por %p133, %p134
      %p136 = scmp.le.s32.totalorder 1, %s13
      %p137 = scmp.lt.s32.totalorder %s13, 3
      %p138 = pnand %p136, %p137
      %p139 = pneg %p138
      // Predicated region
      $region9: #{tpu_custom_call.1} parent=5 // pred_check
        _
      $region10: #{tpu_custom_call.1} parent=5 // pred_check_branch
        %141 = sbr.rel (%p138) target = $region12
      $region11: #{tpu_custom_call.1} parent=5 // pred_region
        %s142 = ssub.s32 %s13, 1
        // Predicated region
        $region13: #{tpu_custom_call.1} parent=11 // pred_check
          %p143 = pneg %p60
        $region14: #{tpu_custom_call.1} parent=11 // pred_check_branch
          %145 = sbr.rel (%p143) target = $region16
        $region15: #{tpu_custom_call.1} parent=11 // pred_region
          _
        $region16: #{tpu_custom_call.1} parent=11 // pred_fallthru
          _
        // Predicated region
        $region17: #{tpu_custom_call.1} parent=11 // pred_check
          %p146 = pneg %p81
        $region18: #{tpu_custom_call.1} parent=11 // pred_check_branch
          %148 = sbr.rel (%p146) target = $region20
        $region19: #{tpu_custom_call.1} parent=11 // pred_region
          _
        $region20: #{tpu_custom_call.1} parent=11 // pred_fallthru
          _
        // Predicated region
        $region21: #{tpu_custom_call.1} parent=11 // pred_check
          %p149 = pneg %p102
        $region22: #{tpu_custom_call.1} parent=11 // pred_check_branch
          %151 = sbr.rel (%p149) target = $region24
        $region23: #{tpu_custom_call.1} parent=11 // pred_region
          _
        $region24: #{tpu_custom_call.1} parent=11 // pred_fallthru
          _
      $region12: #{tpu_custom_call.1} parent=5 // pred_fallthru
        _
      %p152 = scmp.lt.s32.totalorder %s13, 2
      // Predicated region
      $region25: #{tpu_custom_call.1} parent=5 // pred_check
        %p153 = pneg %p152
      $region26: #{tpu_custom_call.1} parent=5 // pred_check_branch
        %155 = sbr.rel (%p153) target = $region28
      $region27: #{tpu_custom_call.1} parent=5 // pred_region
        // Predicated region
        $region29: #{tpu_custom_call.1} parent=27 // pred_check
          %p156 = pneg %p33
        $region30: #{tpu_custom_call.1} parent=27 // pred_check_branch
          %158 = sbr.rel (%p156) target = $region32
        $region31: #{tpu_custom_call.1} parent=27 // pred_region
          %p159 = scmp.lt.s32.totalorder %s13, 1
          %s160 = scalar_select %p159, %s13, 1
          %s161 = smul.addr %s160, 6
          %s162 = smul.addr %s161, 2
          %s163 = scalar_lea.vmem %s0, %s162
        $region32: #{tpu_custom_call.1} parent=27 // pred_fallthru
          _
      $region28: #{tpu_custom_call.1} parent=5 // pred_fallthru
        _
      %p164 = scmp.le.s32.totalorder 1, %s13
      %p165 = scmp.lt.s32.totalorder %s13, 3
      %p166 = pnand %p164, %p165
      %p167 = pneg %p166
      // Predicated region
      $region33: #{tpu_custom_call.1} parent=5 // pred_check
        _
      $region34: #{tpu_custom_call.1} parent=5 // pred_check_branch
        %169 = sbr.rel (%p166) target = $region36
      $region35: #{tpu_custom_call.1} parent=5 // pred_region
        %s170 = ssub.s32 %s13, 1
        %p171 = scmp.lt.s32.totalorder %s18, 1
        %s172 = scalar_select %p171, %s18, 1
        %s173 = smul.addr %s172, 6
        %s174 = smul.addr %s173, 2
        %s175 = scalar_lea.vmem %s0, %s174
        %p176 = pneg %p39
        %p177 = pneg %p36
        %p178 = pneg %p60
        %p179 = pneg %p57
        %p180 = pneg %p81
        %p181 = pneg %p78
        %p182 = pneg %p102
        %p183 = pneg %p99
        %p184 = pneg %p128
        %p185 = pneg %p125
        %s186 = sand.u32 %s115, 1
        %s187 = scalar_lea.sflag [#allocation3], %s186
        %s188 = sand.u32 %s115, 1
        %s189 = smul.addr %s188, 8
        %s190 = scalar_lea.vmem [#allocation2], %s189
        %p191 = scmp.lt.s32.totalorder %s18, 1
        %s192 = scalar_select %p191, %s18, 1
        %s193 = smul.addr %s192, 6
        %s194 = smul.addr %s193, 2
        %s195 = scalar_lea.vmem %s0, %s194
        %v197 = vld [vmem:[%s195] sm:$0x3]
        %v198 = vld [vmem:[%s1] sm:$0xf]
        %s199 = scalar_lea.vmem %s195, 4
        %v200 = vld [vmem:[%s199] sm:$0x3]
        %s201 = scalar_lea.vmem %s1, 4
        %v202 = vld [vmem:[%s201] sm:$0xf]
        %vm203 = vcmask 31744
        %v205 = vsel %vm203, %v202, 0
        %vm207 = vcmask 1041408
        %v209 = vsel %vm207, %v200, 0
        %211 = vmatpush.bf16.msra.mxu0 0
        %212 = vmatpush.bf16.msra.mxu0 0
        %213 = vmatpush.bf16.msra.mxu0 0
        %214 = vmatpush.bf16.msra.mxu0 0
        %215 = vmatpush.bf16.msra.mxu0 0
        %216 = vmatpush.bf16.msra.mxu0 0
        %217 = vmatpush.bf16.msra.mxu0 0
        %218 = vmatpush.bf16.msra.mxu0 %v209
        %219 = vmatmul.bf16.gmra.mxu0 %v205
        %v220 = vpop.f32.mrf.mxu0
        %v221 = vadd.f32 0.0, %v220
        %v222 = vpop.f32.mrf.mxu0
        %223 = vdwg.mxu0
        %v225 = vsel %vm203, %v198, 0
        %v228 = vsel %vm207, %v197, 0
        %230 = vmatpush.bf16.msra.mxu0 0
        %231 = vmatpush.bf16.msra.mxu0 0
        %232 = vmatpush.bf16.msra.mxu0 0
        %233 = vmatpush.bf16.msra.mxu0 0
        %234 = vmatpush.bf16.msra.mxu0 0
        %235 = vmatpush.bf16.msra.mxu0 0
        %236 = vmatpush.bf16.msra.mxu0 0
        %237 = vmatpush.bf16.msra.mxu0 %v228
        %238 = vmatmul.bf16.gmra.mxu0 %v225
        %v239 = vpop.f32.mrf.mxu0
        %v240 = vadd.f32 %v221, %v239
        %v241 = vpop.f32.mrf.mxu0
        %242 = vdwg.mxu0
        %s243 = scalar_lea.vmem %s195, 8
        %v244 = vld [vmem:[%s243] sm:$0x3]
        %s245 = scalar_lea.vmem %s1, 8
        %v246 = vld [vmem:[%s245] sm:$0xf]
        %v248 = vsel %vm203, %v246, 0
        %v251 = vsel %vm207, %v244, 0
        %253 = vmatpush.bf16.msra.mxu0 0
        %254 = vmatpush.bf16.msra.mxu0 0
        %255 = vmatpush.bf16.msra.mxu0 0
        %256 = vmatpush.bf16.msra.mxu0 0
        %257 = vmatpush.bf16.msra.mxu0 0
        %258 = vmatpush.bf16.msra.mxu0 0
        %259 = vmatpush.bf16.msra.mxu0 0
        %260 = vmatpush.bf16.msra.mxu0 %v251
        %261 = vmatmul.bf16.gmra.mxu0 %v248
        %v262 = vpop.f32.mrf.mxu0
        %v263 = vadd.f32 0.0, %v262
        %v264 = vpop.f32.mrf.mxu0
        %265 = vdwg.mxu0
        %v266 = vadd.f32 %v240, %v263
        %s267 = scalar_lea.vmem %s195, 2
        %v268 = vld [vmem:[%s267] sm:$0x3]
        %s269 = scalar_lea.vmem %s1, 12
        %v270 = vld [vmem:[%s269] sm:$0xf]
        %v272 = vsel %vm203, %v270, 0
        %v275 = vsel %vm207, %v268, 0
        %277 = vmatpush.bf16.msra.mxu0 0
        %278 = vmatpush.bf16.msra.mxu0 0
        %279 = vmatpush.bf16.msra.mxu0 0
        %280 = vmatpush.bf16.msra.mxu0 0
        %281 = vmatpush.bf16.msra.mxu0 0
        %282 = vmatpush.bf16.msra.mxu0 0
        %283 = vmatpush.bf16.msra.mxu0 0
        %284 = vmatpush.bf16.msra.mxu0 %v275
        %285 = vmatmul.bf16.gmra.mxu0 %v272
        %v286 = vpop.f32.mrf.mxu0
        %v287 = vadd.f32 0.0, %v286
        %v288 = vpop.f32.mrf.mxu0
        %289 = vdwg.mxu0
        %v290 = vadd.f32 %v266, %v287
        %s291 = scalar_lea.vmem %s195, 6
        %v292 = vld [vmem:[%s291] sm:$0x3]
        %s293 = scalar_lea.vmem %s1, 16
        %v294 = vld [vmem:[%s293] sm:$0xf]
        %v296 = vsel %vm203, %v294, 0
        %v299 = vsel %vm207, %v292, 0
        %301 = vmatpush.bf16.msra.mxu0 0
        %302 = vmatpush.bf16.msra.mxu0 0
        %303 = vmatpush.bf16.msra.mxu0 0
        %304 = vmatpush.bf16.msra.mxu0 0
        %305 = vmatpush.bf16.msra.mxu0 0
        %306 = vmatpush.bf16.msra.mxu0 0
        %307 = vmatpush.bf16.msra.mxu0 0
        %308 = vmatpush.bf16.msra.mxu0 %v299
        %309 = vmatmul.bf16.gmra.mxu0 %v296
        %v310 = vpop.f32.mrf.mxu0
        %v311 = vadd.f32 0.0, %v310
        %v312 = vpop.f32.mrf.mxu0
        %313 = vdwg.mxu0
        %v314 = vadd.f32 %v290, %v311
        %s315 = scalar_lea.vmem %s195, 10
        %v316 = vld [vmem:[%s315] sm:$0x3]
        %s317 = scalar_lea.vmem %s1, 20
        %v318 = vld [vmem:[%s317] sm:$0xf]
        %v320 = vsel %vm203, %v318, 0
        %v323 = vsel %vm207, %v316, 0
        %325 = vmatpush.bf16.msra.mxu0 0
        %326 = vmatpush.bf16.msra.mxu0 0
        %327 = vmatpush.bf16.msra.mxu0 0
        %328 = vmatpush.bf16.msra.mxu0 0
        %329 = vmatpush.bf16.msra.mxu0 0
        %330 = vmatpush.bf16.msra.mxu0 0
        %331 = vmatpush.bf16.msra.mxu0 0
        %332 = vmatpush.bf16.msra.mxu0 %v323
        %333 = vmatmul.bf16.gmra.mxu0 %v320
        %v334 = vpop.f32.mrf.mxu0
        %v335 = vadd.f32 0.0, %v334
        %v336 = vpop.f32.mrf.mxu0
        %337 = vdwg.mxu0
        %v338 = vadd.f32 %v314, %v335
        %s339 = scalar_lea.vmem %s1, 24
        %v340 = vld [vmem:[%s339] sm:$0xf]
        %341 = vst [vmem:[#allocation1] ss:$4 sm:$0xff] %v197
        %v342 = vld.sshfl [vmem:[#allocation1] sm:$0xff pattern:$0x73625140]
        %344 = vrot.lane.b32.xlu0 %v342, 120
        %v345 = vpop.permute.xlu0 %344
        %v347 = vsel %vm203, %v340, 0
        %v350 = vsel %vm207, %v345, 0
        %352 = vmatpush.bf16.msra.mxu0 0
        %353 = vmatpush.bf16.msra.mxu0 0
        %354 = vmatpush.bf16.msra.mxu0 0
        %355 = vmatpush.bf16.msra.mxu0 0
        %356 = vmatpush.bf16.msra.mxu0 0
        %357 = vmatpush.bf16.msra.mxu0 0
        %358 = vmatpush.bf16.msra.mxu0 0
        %359 = vmatpush.bf16.msra.mxu0 %v350
        %360 = vmatmul.bf16.gmra.mxu0 %v347
        %v361 = vpop.f32.mrf.mxu0
        %v362 = vadd.f32 0.0, %v361
        %v363 = vpop.f32.mrf.mxu0
        %364 = vdwg.mxu0
        %v365 = vadd.f32 %v338, %v362
        %v366 = vld [vmem:[%s199] sm:$0x3]
        %s367 = scalar_lea.vmem %s1, 28
        %v368 = vld [vmem:[%s367] sm:$0xf]
        %370 = vst [vmem:[#allocation1] ss:$4 sm:$0xff] %v366
        %v371 = vld.sshfl [vmem:[#allocation1] sm:$0xff pattern:$0x73625140]
        %373 = vrot.lane.b32.xlu0 %v371, 120
        %v374 = vpop.permute.xlu0 %373
        %v376 = vsel %vm203, %v368, 0
        %v379 = vsel %vm207, %v374, 0
        %381 = vmatpush.bf16.msra.mxu0 0
        %382 = vmatpush.bf16.msra.mxu0 0
        %383 = vmatpush.bf16.msra.mxu0 0
        %384 = vmatpush.bf16.msra.mxu0 0
        %385 = vmatpush.bf16.msra.mxu0 0
        %386 = vmatpush.bf16.msra.mxu0 0
        %387 = vmatpush.bf16.msra.mxu0 0
        %388 = vmatpush.bf16.msra.mxu0 %v379
        %389 = vmatmul.bf16.gmra.mxu0 %v376
        %v390 = vpop.f32.mrf.mxu0
        %v391 = vadd.f32 0.0, %v390
        %v392 = vpop.f32.mrf.mxu0
        %393 = vdwg.mxu0
        %v394 = vadd.f32 %v365, %v391
        %v395 = vld [vmem:[%s243] sm:$0x3]
        %s396 = scalar_lea.vmem %s1, 32
        %v397 = vld [vmem:[%s396] sm:$0xf]
        %399 = vst [vmem:[#allocation1] ss:$4 sm:$0xff] %v395
        %v400 = vld.sshfl [vmem:[#allocation1] sm:$0xff pattern:$0x73625140]
        %402 = vrot.lane.b32.xlu0 %v400, 120
        %v403 = vpop.permute.xlu0 %402
        %v405 = vsel %vm203, %v397, 0
        %v408 = vsel %vm207, %v403, 0
        %410 = vmatpush.bf16.msra.mxu0 0
        %411 = vmatpush.bf16.msra.mxu0 0
        %412 = vmatpush.bf16.msra.mxu0 0
        %413 = vmatpush.bf16.msra.mxu0 0
        %414 = vmatpush.bf16.msra.mxu0 0
        %415 = vmatpush.bf16.msra.mxu0 0
        %416 = vmatpush.bf16.msra.mxu0 0
        %417 = vmatpush.bf16.msra.mxu0 %v408
        %418 = vmatmul.bf16.gmra.mxu0 %v405
        %v419 = vpop.f32.mrf.mxu0
        %v420 = vadd.f32 0.0, %v419
        %v421 = vpop.f32.mrf.mxu0
        %422 = vdwg.mxu0
        %v423 = vadd.f32 %v394, %v420
        %v424 = vld [vmem:[%s2] sm:$0xff]
        %426 = vset.pattern.permute.xlu0 0
        %427 = vperm.xlu0 %426, %v424
        %v428 = vpop.permute.xlu0 %427
        %v430 = vmul.f32 %v423, %v428
        %v431 = vld [vmem:[%s3] sm:$0xff]
        %433 = vset.pattern.permute.xlu0 0
        %434 = vperm.xlu0 %433, %v431
        %v435 = vpop.permute.xlu0 %434
        %v437 = vadd.f32 %v430, %v435
        %vm438 = vcmp.ge.f32.partialorder %v437, 0.0
        %v439 = vmul.f32 %v437, 0.1
        %v440 = vsel %vm438, %v437, %v439
        %vm441 = vcmask 523264
        %442 = vst.msk [vmem:[%s190] sm:$0xff] %vm441, %v440
        %s443 = sand.u32 %s115, 1
        %s444 = scalar_lea.sflag [#allocation3], %s443
        %s445 = sand.u32 %s115, 1
        %s446 = smul.addr %s445, 8
        %s447 = scalar_lea.vmem [#allocation2], %s446
        // Predicated region
        $region37: #{tpu_custom_call.1} parent=35 // pred_check
          %p448 = pneg %p125
        $region38: #{tpu_custom_call.1} parent=35 // pred_check_branch
          %450 = sbr.rel (%p448) target = $region40
        $region39: #{tpu_custom_call.1} parent=35 // pred_region
          %452 = vsyncadd %s444, 0
          %s453 = smul.addr %s18, 8
          %s454 = scalar_lea.hbm %s4, %s453
          %s456 = sshll.u32 %s447, 4
          %s457 = int_to_ptr.vmem [resolvable:$true] %s456
          %s458 = sshll.u32 %s454, 4
          %s459 = int_to_ptr.hbm [resolvable:$true] %s458
          %461 = dma.vmem_to_hbm [thread:$0]  %s457, 128, %s459, %s444
        $region40: #{tpu_custom_call.1} parent=35 // pred_fallthru
          _
      $region36: #{tpu_custom_call.1} parent=5 // pred_fallthru
        _
      %p462 = scmp.le.s32.totalorder 2, %s13
      // Predicated region
      $region41: #{tpu_custom_call.1} parent=5 // pred_check
        %p463 = pneg %p462
      $region42: #{tpu_custom_call.1} parent=5 // pred_check_branch
        %465 = sbr.rel (%p463) target = $region44
      $region43: #{tpu_custom_call.1} parent=5 // pred_region
        %s466 = ssub.s32 %s13, 2
        // Predicated region
        $region45: #{tpu_custom_call.1} parent=43 // pred_check
          %p467 = pneg %p131
        $region46: #{tpu_custom_call.1} parent=43 // pred_check_branch
          %469 = sbr.rel (%p467) target = $region48
        $region47: #{tpu_custom_call.1} parent=43 // pred_region
          %s470 = sand.u32 %s116, 1
          %s471 = scalar_lea.sflag [#allocation3], %s470
          %s472 = sand.u32 %s116, 1
          %s473 = smul.addr %s472, 8
          %s474 = scalar_lea.vmem [#allocation2], %s473
          %476 = dma.done %s471, 128
        $region48: #{tpu_custom_call.1} parent=43 // pred_fallthru
          _
      $region44: #{tpu_custom_call.1} parent=5 // pred_fallthru
        _
    $region6: #{tpu_custom_call.1} parent=1 // loop_footer
      %s17 = sadd.s32 1, %s13
    $region7: #{tpu_custom_call.1} parent=1 // loop_footer_branch
      %12 = sbr.rel target = $region3
    $region8: #{tpu_custom_call.1} parent=1 // loop_exit
      _
    %477 = vsyncpa [#allocation3], 1
    %s478 = scalar_lea.sflag [#allocation3], 1
    %479 = vsyncpa %s478, 1

</llo_original>
